<compile_context>
chip_gen: v5e
topology: v5e:2x2
jax: 0.10.0
libtpu: 0.0.40
codegen_flags: <defaults>
</compile_context>

<pallas_src>
import functools

import jax
import jax.numpy as jnp
from jax.experimental import pallas as pl
from jax.experimental.pallas import tpu as pltpu

LANE = 128          # lane-padded width for inp / hid / out
BIAS_ROWS = 8       # one (8, 128) tile holding b_inp / b_h / b_out
WSLAB_ROWS = 4 * LANE + BIAS_ROWS


def actor_seq_kernel(h0_ref, w_ref, x_ref, out_ref, h_scr, *, chunk):
    """One chunk of `chunk` rollout timesteps per grid iteration.

    h0_ref : (B, LANE)              initial hidden, resident
    w_ref  : (4*LANE+8, LANE)       packed weights/biases, resident
    x_ref  : (chunk, B, LANE)       observations for this chunk
    out_ref: (chunk, B, 2*LANE)     lanes [0:LANE)=h_t, lanes [LANE:2*LANE)=y_t
    h_scr  : (B, LANE)              VMEM-carried hidden state (across chunks)
    """
    @pl.when(pl.program_id(0) == 0)
    def _init():
        h_scr[...] = h0_ref[...]

    # Static, tile-aligned views into the packed weight slab (loop-invariant).
    w_inp = w_ref[0:LANE, :]                        # (LANE, LANE)   rows 0:inp valid
    w_rec = w_ref[LANE:3 * LANE, :]                 # (2*LANE, LANE) [W_zh ; W_hh]
    w_out = w_ref[3 * LANE:4 * LANE, :]             # (LANE, LANE)   cols 0:out valid
    bias = w_ref[4 * LANE:4 * LANE + BIAS_ROWS, :]  # (8, LANE)
    b_inp = bias[0:1, :]
    b_h = bias[1:2, :]
    b_out = bias[2:3, :]

    h = h_scr[...]                                  # (B, LANE)

    # Fully-unrolled static loop: all Ref indices are compile-time constants.
    for c in range(chunk):
        x = x_ref[c]                                # (B, LANE)

        # inp -> tanh
        z = jnp.tanh(jnp.dot(x, w_inp, preferred_element_type=jnp.float32) + b_inp)

        # SNSCell (guessed Elman cell); fused single MXU operand over [z ; h].
        zh = jnp.concatenate([z, h], axis=-1)       # (B, 2*LANE)
        h = jnp.tanh(jnp.dot(zh, w_rec, preferred_element_type=jnp.float32) + b_h)

        # out Linear
        y = jnp.dot(h, w_out, preferred_element_type=jnp.float32) + b_out

        out_ref[c] = jnp.concatenate([h, y], axis=-1)   # lane-dense (B, 2*LANE)

    h_scr[...] = h


def _pad2(a, rows, cols):
    a = jnp.asarray(a, jnp.float32)
    return jnp.zeros((rows, cols), jnp.float32).at[: a.shape[0], : a.shape[1]].set(a)


def pack_params(params):
    """Pack all weights/biases into one zero-padded (4*128+8, 128) f32 slab."""
    inp, hid = params["w_inp"].shape
    out = params["w_out"].shape[1]
    assert inp <= LANE and hid <= LANE and out <= LANE, "dims must fit in one lane tile"

    bias = jnp.zeros((BIAS_ROWS, LANE), jnp.float32)
    bias = bias.at[0, :hid].set(params["b_inp"].reshape(-1))
    bias = bias.at[1, :hid].set(params["b_h"].reshape(-1))
    bias = bias.at[2, :out].set(params["b_out"].reshape(-1))

    return jnp.concatenate(
        [
            _pad2(params["w_inp"], LANE, LANE),
            _pad2(params["w_zh"], LANE, LANE),
            _pad2(params["w_hh"], LANE, LANE),
            _pad2(params["w_out"], LANE, LANE),
            bias,
        ],
        axis=0,
    )


def actor_rollout(x_seq, hidden0, params, chunk=8):
    """Run T recurrent steps in one pallas_call.

    x_seq   : (T, B, inp) f32
    hidden0 : (1, hid) or (B, hid) f32   (Actor.reset() gives zeros(1, hid))
    returns (y_seq (T, B, out), h_seq (T, B, hid))
    """
    T, B, inp = x_seq.shape
    hid = params["w_inp"].shape[1]
    out = params["w_out"].shape[1]

    chunk = max(1, min(chunk, T))
    n_chunks = -(-T // chunk)           # ceil div
    T_pad = n_chunks * chunk            # padded steps come after valid ones -> discarded

    # Broadcasting a (1, hid) hidden across the batch before the matmul is
    # mathematically identical to torch's broadcast inside the cell; from step 1
    # on, the state is per-row exactly like repeated module calls with a batch.
    h0 = jnp.broadcast_to(jnp.asarray(hidden0, jnp.float32), (B, hid))
    h0_p = jnp.zeros((B, LANE), jnp.float32).at[:, :hid].set(h0)
    x_p = jnp.zeros((T_pad, B, LANE), jnp.float32).at[:T, :, :inp].set(
        jnp.asarray(x_seq, jnp.float32))
    w_slab = pack_params(params)

    out_slab = pl.pallas_call(
        functools.partial(actor_seq_kernel, chunk=chunk),
        out_shape=jax.ShapeDtypeStruct((T_pad, B, 2 * LANE), jnp.float32),
        grid=(n_chunks,),
        in_specs=[
            pl.BlockSpec((B, LANE), lambda t: (0, 0)),               # h0  (resident)
            pl.BlockSpec((WSLAB_ROWS, LANE), lambda t: (0, 0)),      # weights (resident)
            pl.BlockSpec((chunk, B, LANE), lambda t: (t, 0, 0)),     # x chunk
        ],
        out_specs=pl.BlockSpec((chunk, B, 2 * LANE), lambda t: (t, 0, 0)),
        scratch_shapes=[pltpu.VMEM((B, LANE), jnp.float32)],         # carried hidden
        compiler_params=pltpu.CompilerParams(
            dimension_semantics=("arbitrary",)),                     # sequential recurrence
    )(h0_p, w_slab, x_p)

    y_seq = out_slab[:T, :, LANE:LANE + out]
    h_seq = out_slab[:T, :, :hid]
    return y_seq, h_seq


def actor_forward(x, hidden, params):
    """Single-step API matching Actor.forward: (y [B,out], hidden [B,hid])."""
    y_seq, h_seq = actor_rollout(x[None], hidden, params, chunk=1)
    return y_seq[0], h_seq[0]


def init_params(key, inp_size, hid_size, out_size):
    ks = jax.random.split(key, 7)
    u = lambda k, shape, fan_in: jax.random.uniform(
        k, shape, jnp.float32, -1.0 / jnp.sqrt(fan_in), 1.0 / jnp.sqrt(fan_in))
    return {
        # stored as [in, out] (transposed vs torch's [out, in]); biases as [1, out]
        "w_inp": u(ks[0], (inp_size, hid_size), inp_size),
        "b_inp": u(ks[1], (1, hid_size), inp_size),
        "w_zh":  u(ks[2], (hid_size, hid_size), hid_size),
        "w_hh":  u(ks[3], (hid_size, hid_size), hid_size),
        "b_h":   u(ks[4], (1, hid_size), hid_size),
        "w_out": u(ks[5], (hid_size, out_size), hid_size),
        "b_out": u(ks[6], (1, out_size), hid_size),
    }


def reference_rollout(x_seq, hidden0, params):
    """Pure-JAX reference of the same recurrence (for correctness check)."""
    T, B, _ = x_seq.shape
    hid = params["w_inp"].shape[1]
    h = jnp.broadcast_to(hidden0, (B, hid))
    ys, hs = [], []
    for t in range(T):
        z = jnp.tanh(x_seq[t] @ params["w_inp"] + params["b_inp"])
        h = jnp.tanh(z @ params["w_zh"] + h @ params["w_hh"] + params["b_h"])
        y = h @ params["w_out"] + params["b_out"]
        ys.append(y)
        hs.append(h)
    return jnp.stack(ys), jnp.stack(hs)


if __name__ == "__main__":
    # CartPole-like sizes: obs dim 4, 2 actions, hidden 32, batch 8, rollout 8.
    T, B, INP, HID, OUT = 8, 8, 4, 32, 2

    key = jax.random.PRNGKey(0)
    k_x, k_p = jax.random.split(key)

    x_seq = jax.random.normal(k_x, (T, B, INP), dtype=jnp.float32)
    hidden0 = jnp.zeros((1, HID), dtype=jnp.float32)   # Actor.reset(): zeros(1, hid)
    params = init_params(k_p, INP, HID, OUT)

    # Full rollout in a single pallas_call (weights resident, hidden in VMEM scratch).
    y_seq, h_seq = actor_rollout(x_seq, hidden0, params)
    jax.block_until_ready((y_seq, h_seq))
    assert y_seq.shape == (T, B, OUT) and h_seq.shape == (T, B, HID)

    # Single-step API matching Actor.forward.
    y1, h1 = actor_forward(x_seq[0], hidden0, params)
    jax.block_until_ready((y1, h1))
    assert y1.shape == (B, OUT) and h1.shape == (B, HID)

    # Non-divisible rollout length exercises the T-padding path.
    y5, h5 = actor_rollout(x_seq[:5], hidden0, params)
    jax.block_until_ready((y5, h5))
    assert y5.shape == (5, B, OUT) and h5.shape == (5, B, HID)

    # Correctness vs pure-JAX reference.
    y_ref, h_ref = reference_rollout(x_seq, hidden0, params)
    assert jnp.allclose(y_seq, y_ref, atol=1e-3, rtol=1e-3)
    assert jnp.allclose(h_seq, h_ref, atol=1e-3, rtol=1e-3)
    assert jnp.allclose(y1, y_ref[0], atol=1e-3, rtol=1e-3)
    assert jnp.allclose(y5, y_ref[:5], atol=1e-3, rtol=1e-3)
    assert jnp.allclose(h5, h_ref[:5], atol=1e-3, rtol=1e-3)

    print("KERNEL_OK")
</pallas_src>

<mosaic_0001>
module attributes {stable_mosaic.version = 11 : i64} {
  func.func @actor_seq_kernel(%arg0: i32, %arg1: memref<8x128xf32, #tpu.memory_space<vmem>>, %arg2: memref<520x128xf32, #tpu.memory_space<vmem>>, %arg3: memref<8x8x128xf32, #tpu.memory_space<vmem>>, %arg4: memref<8x8x256xf32, #tpu.memory_space<vmem>>, %arg5: memref<8x128xf32, #tpu.memory_space<vmem>>) attributes {dimension_semantics = [#tpu.dimension_semantics<arbitrary>], iteration_bounds = array<i64: 1>, scalar_prefetch = 0 : i64, scratch_operands = 1 : i64, tpu.core_type = #tpu.core_type<tc>, window_params = [{pipeline_mode = #tpu.pipeline_mode<synchronous>, transform_indices = @transform_0, window_bounds = array<i64: 8, 128>}, {pipeline_mode = #tpu.pipeline_mode<synchronous>, transform_indices = @transform_1, window_bounds = array<i64: 520, 128>}, {transform_indices = @transform_2, window_bounds = array<i64: 8, 8, 128>}, {transform_indices = @transform_3, window_bounds = array<i64: 8, 8, 256>}]} {
    %c0_i32 = arith.constant 0 : i32
    %0 = arith.cmpi eq, %arg0, %c0_i32 : i32
    %1 = arith.extui %0 : i1 to i32
    %c0_i32_0 = arith.constant 0 : i32
    %2 = arith.cmpi ne, %1, %c0_i32_0 : i32
    scf.if %2 {
      %c0_73 = arith.constant 0 : index
      %c0_74 = arith.constant 0 : index
      %156 = vector.load %arg1[%c0_73, %c0_74] : memref<8x128xf32, #tpu.memory_space<vmem>>, vector<8x128xf32>
      %c0_75 = arith.constant 0 : index
      %c0_76 = arith.constant 0 : index
      %157 = vector.load %arg5[%c0_75, %c0_76] : memref<8x128xf32, #tpu.memory_space<vmem>>, vector<8x128xf32>
      tpu.vector_store %arg5[%c0_75, %c0_76], %156 {strides = array<i32>} : memref<8x128xf32, #tpu.memory_space<vmem>>, vector<8x128xf32>,
    } else {
    }
    %c0 = arith.constant 0 : index
    %c0_1 = arith.constant 0 : index
    %3 = vector.load %arg2[%c0, %c0_1] : memref<520x128xf32, #tpu.memory_space<vmem>>, vector<128x128xf32>
    %c128 = arith.constant 128 : index
    %c0_2 = arith.constant 0 : index
    %4 = vector.load %arg2[%c128, %c0_2] : memref<520x128xf32, #tpu.memory_space<vmem>>, vector<256x128xf32>
    %c384 = arith.constant 384 : index
    %c0_3 = arith.constant 0 : index
    %5 = vector.load %arg2[%c384, %c0_3] : memref<520x128xf32, #tpu.memory_space<vmem>>, vector<128x128xf32>
    %c512 = arith.constant 512 : index
    %c0_4 = arith.constant 0 : index
    %6 = vector.load %arg2[%c512, %c0_4] : memref<520x128xf32, #tpu.memory_space<vmem>>, vector<8x128xf32>
    %7 = vector.extract_strided_slice %6 {offsets = [0, 0], sizes = [1, 128], strides = [1, 1]} : vector<8x128xf32> to vector<1x128xf32>
    %8 = vector.extract_strided_slice %6 {offsets = [1, 0], sizes = [1, 128], strides = [1, 1]} : vector<8x128xf32> to vector<1x128xf32>
    %9 = vector.extract_strided_slice %6 {offsets = [2, 0], sizes = [1, 128], strides = [1, 1]} : vector<8x128xf32> to vector<1x128xf32>
    %c0_5 = arith.constant 0 : index
    %c0_6 = arith.constant 0 : index
    %10 = vector.load %arg5[%c0_5, %c0_6] : memref<8x128xf32, #tpu.memory_space<vmem>>, vector<8x128xf32>
    %c0_7 = arith.constant 0 : index
    %c0_8 = arith.constant 0 : index
    %c0_9 = arith.constant 0 : index
    %11 = vector.load %arg3[%c0_7, %c0_8, %c0_9] : memref<8x8x128xf32, #tpu.memory_space<vmem>>, vector<1x8x128xf32>
    %12 = vector.shape_cast %11 : vector<1x8x128xf32> to vector<8x128xf32>
    %cst = arith.constant dense<0.000000e+00> : vector<8x128xf32>
    %13 = tpu.matmul %12, %3, %cst {dimension_numbers = #tpu.dot_dimension_numbers<[1], [0], [0], [1], [0, 0, 1, 1], [], []>} : vector<8x128xf32>, vector<128x128xf32>, vector<8x128xf32> -> vector<8x128xf32>
    %14 = vector.broadcast %7 : vector<1x128xf32> to vector<8x128xf32>
    %15 = arith.addf %13, %14 : vector<8x128xf32>
    %16 = math.tanh %15 : vector<8x128xf32>
    %17 = tpu.concatenate %16, %10 in 1 : vector<8x128xf32>, vector<8x128xf32> -> vector<8x256xf32>
    %cst_10 = arith.constant dense<0.000000e+00> : vector<8x128xf32>
    %18 = tpu.matmul %17, %4, %cst_10 {dimension_numbers = #tpu.dot_dimension_numbers<[1], [0], [0], [1], [0, 0, 1, 1], [], []>} : vector<8x256xf32>, vector<256x128xf32>, vector<8x128xf32> -> vector<8x128xf32>
    %19 = vector.broadcast %8 : vector<1x128xf32> to vector<8x128xf32>
    %20 = arith.addf %18, %19 : vector<8x128xf32>
    %21 = math.tanh %20 : vector<8x128xf32>
    %cst_11 = arith.constant dense<0.000000e+00> : vector<8x128xf32>
    %22 = tpu.matmul %21, %5, %cst_11 {dimension_numbers = #tpu.dot_dimension_numbers<[1], [0], [0], [1], [0, 0, 1, 1], [], []>} : vector<8x128xf32>, vector<128x128xf32>, vector<8x128xf32> -> vector<8x128xf32>
    %23 = vector.broadcast %9 : vector<1x128xf32> to vector<8x128xf32>
    %24 = arith.addf %22, %23 : vector<8x128xf32>
    %25 = tpu.concatenate %21, %24 in 1 : vector<8x128xf32>, vector<8x128xf32> -> vector<8x256xf32>
    %c0_12 = arith.constant 0 : index
    %c0_13 = arith.constant 0 : index
    %c0_14 = arith.constant 0 : index
    %26 = vector.load %arg4[%c0_12, %c0_13, %c0_14] : memref<8x8x256xf32, #tpu.memory_space<vmem>>, vector<1x8x256xf32>
    %27 = vector.shape_cast %26 : vector<1x8x256xf32> to vector<8x256xf32>
    %28 = vector.shape_cast %25 : vector<8x256xf32> to vector<1x8x256xf32>
    tpu.vector_store %arg4[%c0_12, %c0_13, %c0_14], %28 {strides = array<i32>} : memref<8x8x256xf32, #tpu.memory_space<vmem>>, vector<1x8x256xf32>,
    %c1 = arith.constant 1 : index
    %c0_15 = arith.constant 0 : index
    %c0_16 = arith.constant 0 : index
    %29 = vector.load %arg3[%c1, %c0_15, %c0_16] : memref<8x8x128xf32, #tpu.memory_space<vmem>>, vector<1x8x128xf32>
    %30 = vector.shape_cast %29 : vector<1x8x128xf32> to vector<8x128xf32>
    %cst_17 = arith.constant dense<0.000000e+00> : vector<8x128xf32>
    %31 = tpu.matmul %30, %3, %cst_17 {dimension_numbers = #tpu.dot_dimension_numbers<[1], [0], [0], [1], [0, 0, 1, 1], [], []>} : vector<8x128xf32>, vector<128x128xf32>, vector<8x128xf32> -> vector<8x128xf32>
    %32 = vector.broadcast %7 : vector<1x128xf32> to vector<8x128xf32>
    %33 = arith.addf %31, %32 : vector<8x128xf32>
    %34 = math.tanh %33 : vector<8x128xf32>
    %35 = tpu.concatenate %34, %21 in 1 : vector<8x128xf32>, vector<8x128xf32> -> vector<8x256xf32>
    %cst_18 = arith.constant dense<0.000000e+00> : vector<8x128xf32>
    %36 = tpu.matmul %35, %4, %cst_18 {dimension_numbers = #tpu.dot_dimension_numbers<[1], [0], [0], [1], [0, 0, 1, 1], [], []>} : vector<8x256xf32>, vector<256x128xf32>, vector<8x128xf32> -> vector<8x128xf32>
    %37 = vector.broadcast %8 : vector<1x128xf32> to vector<8x128xf32>
    %38 = arith.addf %36, %37 : vector<8x128xf32>
    %39 = math.tanh %38 : vector<8x128xf32>
    %cst_19 = arith.constant dense<0.000000e+00> : vector<8x128xf32>
    %40 = tpu.matmul %39, %5, %cst_19 {dimension_numbers = #tpu.dot_dimension_numbers<[1], [0], [0], [1], [0, 0, 1, 1], [], []>} : vector<8x128xf32>, vector<128x128xf32>, vector<8x128xf32> -> vector<8x128xf32>
    %41 = vector.broadcast %9 : vector<1x128xf32> to vector<8x128xf32>
    %42 = arith.addf %40, %41 : vector<8x128xf32>
    %43 = tpu.concatenate %39, %42 in 1 : vector<8x128xf32>, vector<8x128xf32> -> vector<8x256xf32>
    %c1_20 = arith.constant 1 : index
    %c0_21 = arith.constant 0 : index
    %c0_22 = arith.constant 0 : index
    %44 = vector.load %arg4[%c1_20, %c0_21, %c0_22] : memref<8x8x256xf32, #tpu.memory_space<vmem>>, vector<1x8x256xf32>
    %45 = vector.shape_cast %44 : vector<1x8x256xf32> to vector<8x256xf32>
    %46 = vector.shape_cast %43 : vector<8x256xf32> to vector<1x8x256xf32>
    tpu.vector_store %arg4[%c1_20, %c0_21, %c0_22], %46 {strides = array<i32>} : memref<8x8x256xf32, #tpu.memory_space<vmem>>, vector<1x8x256xf32>,
    %c2 = arith.constant 2 : index
    %c0_23 = arith.constant 0 : index
    %c0_24 = arith.constant 0 : index
    %47 = vector.load %arg3[%c2, %c0_23, %c0_24] : memref<8x8x128xf32, #tpu.memory_space<vmem>>, vector<1x8x128xf32>
    %48 = vector.shape_cast %47 : vector<1x8x128xf32> to vector<8x128xf32>
    %cst_25 = arith.constant dense<0.000000e+00> : vector<8x128xf32>
    %49 = tpu.matmul %48, %3, %cst_25 {dimension_numbers = #tpu.dot_dimension_numbers<[1], [0], [0], [1], [0, 0, 1, 1], [], []>} : vector<8x128xf32>, vector<128x128xf32>, vector<8x128xf32> -> vector<8x128xf32>
    %50 = vector.broadcast %7 : vector<1x128xf32> to vector<8x128xf32>
    %51 = arith.addf %49, %50 : vector<8x128xf32>
    %52 = math.tanh %51 : vector<8x128xf32>
    %53 = tpu.concatenate %52, %39 in 1 : vector<8x128xf32>, vector<8x128xf32> -> vector<8x256xf32>
    %cst_26 = arith.constant dense<0.000000e+00> : vector<8x128xf32>
    %54 = tpu.matmul %53, %4, %cst_26 {dimension_numbers = #tpu.dot_dimension_numbers<[1], [0], [0], [1], [0, 0, 1, 1], [], []>} : vector<8x256xf32>, vector<256x128xf32>, vector<8x128xf32> -> vector<8x128xf32>
    %55 = vector.broadcast %8 : vector<1x128xf32> to vector<8x128xf32>
    %56 = arith.addf %54, %55 : vector<8x128xf32>
    %57 = math.tanh %56 : vector<8x128xf32>
    %cst_27 = arith.constant dense<0.000000e+00> : vector<8x128xf32>
    %58 = tpu.matmul %57, %5, %cst_27 {dimension_numbers = #tpu.dot_dimension_numbers<[1], [0], [0], [1], [0, 0, 1, 1], [], []>} : vector<8x128xf32>, vector<128x128xf32>, vector<8x128xf32> -> vector<8x128xf32>
    %59 = vector.broadcast %9 : vector<1x128xf32> to vector<8x128xf32>
    %60 = arith.addf %58, %59 : vector<8x128xf32>
    %61 = tpu.concatenate %57, %60 in 1 : vector<8x128xf32>, vector<8x128xf32> -> vector<8x256xf32>
    %c2_28 = arith.constant 2 : index
    %c0_29 = arith.constant 0 : index
    %c0_30 = arith.constant 0 : index
    %62 = vector.load %arg4[%c2_28, %c0_29, %c0_30] : memref<8x8x256xf32, #tpu.memory_space<vmem>>, vector<1x8x256xf32>
    %63 = vector.shape_cast %62 : vector<1x8x256xf32> to vector<8x256xf32>
    %64 = vector.shape_cast %61 : vector<8x256xf32> to vector<1x8x256xf32>
    tpu.vector_store %arg4[%c2_28, %c0_29, %c0_30], %64 {strides = array<i32>} : memref<8x8x256xf32, #tpu.memory_space<vmem>>, vector<1x8x256xf32>,
    %c3 = arith.constant 3 : index
    %c0_31 = arith.constant 0 : index
    %c0_32 = arith.constant 0 : index
    %65 = vector.load %arg3[%c3, %c0_31, %c0_32] : memref<8x8x128xf32, #tpu.memory_space<vmem>>, vector<1x8x128xf32>
    %66 = vector.shape_cast %65 : vector<1x8x128xf32> to vector<8x128xf32>
    %cst_33 = arith.constant dense<0.000000e+00> : vector<8x128xf32>
    %67 = tpu.matmul %66, %3, %cst_33 {dimension_numbers = #tpu.dot_dimension_numbers<[1], [0], [0], [1], [0, 0, 1, 1], [], []>} : vector<8x128xf32>, vector<128x128xf32>, vector<8x128xf32> -> vector<8x128xf32>
    %68 = vector.broadcast %7 : vector<1x128xf32> to vector<8x128xf32>
    %69 = arith.addf %67, %68 : vector<8x128xf32>
    %70 = math.tanh %69 : vector<8x128xf32>
    %71 = tpu.concatenate %70, %57 in 1 : vector<8x128xf32>, vector<8x128xf32> -> vector<8x256xf32>
    %cst_34 = arith.constant dense<0.000000e+00> : vector<8x128xf32>
    %72 = tpu.matmul %71, %4, %cst_34 {dimension_numbers = #tpu.dot_dimension_numbers<[1], [0], [0], [1], [0, 0, 1, 1], [], []>} : vector<8x256xf32>, vector<256x128xf32>, vector<8x128xf32> -> vector<8x128xf32>
    %73 = vector.broadcast %8 : vector<1x128xf32> to vector<8x128xf32>
    %74 = arith.addf %72, %73 : vector<8x128xf32>
    %75 = math.tanh %74 : vector<8x128xf32>
    %cst_35 = arith.constant dense<0.000000e+00> : vector<8x128xf32>
    %76 = tpu.matmul %75, %5, %cst_35 {dimension_numbers = #tpu.dot_dimension_numbers<[1], [0], [0], [1], [0, 0, 1, 1], [], []>} : vector<8x128xf32>, vector<128x128xf32>, vector<8x128xf32> -> vector<8x128xf32>
    %77 = vector.broadcast %9 : vector<1x128xf32> to vector<8x128xf32>
    %78 = arith.addf %76, %77 : vector<8x128xf32>
    %79 = tpu.concatenate %75, %78 in 1 : vector<8x128xf32>, vector<8x128xf32> -> vector<8x256xf32>
    %c3_36 = arith.constant 3 : index
    %c0_37 = arith.constant 0 : index
    %c0_38 = arith.constant 0 : index
    %80 = vector.load %arg4[%c3_36, %c0_37, %c0_38] : memref<8x8x256xf32, #tpu.memory_space<vmem>>, vector<1x8x256xf32>
    %81 = vector.shape_cast %80 : vector<1x8x256xf32> to vector<8x256xf32>
    %82 = vector.shape_cast %79 : vector<8x256xf32> to vector<1x8x256xf32>
    tpu.vector_store %arg4[%c3_36, %c0_37, %c0_38], %82 {strides = array<i32>} : memref<8x8x256xf32, #tpu.memory_space<vmem>>, vector<1x8x256xf32>,
    %c4 = arith.constant 4 : index
    %c0_39 = arith.constant 0 : index
    %c0_40 = arith.constant 0 : index
    %83 = vector.load %arg3[%c4, %c0_39, %c0_40] : memref<8x8x128xf32, #tpu.memory_space<vmem>>, vector<1x8x128xf32>
    %84 = vector.shape_cast %83 : vector<1x8x128xf32> to vector<8x128xf32>
    %cst_41 = arith.constant dense<0.000000e+00> : vector<8x128xf32>
    %85 = tpu.matmul %84, %3, %cst_41 {dimension_numbers = #tpu.dot_dimension_numbers<[1], [0], [0], [1], [0, 0, 1, 1], [], []>} : vector<8x128xf32>, vector<128x128xf32>, vector<8x128xf32> -> vector<8x128xf32>
    %86 = vector.broadcast %7 : vector<1x128xf32> to vector<8x128xf32>
    %87 = arith.addf %85, %86 : vector<8x128xf32>
    %88 = math.tanh %87 : vector<8x128xf32>
    %89 = tpu.concatenate %88, %75 in 1 : vector<8x128xf32>, vector<8x128xf32> -> vector<8x256xf32>
    %cst_42 = arith.constant dense<0.000000e+00> : vector<8x128xf32>
    %90 = tpu.matmul %89, %4, %cst_42 {dimension_numbers = #tpu.dot_dimension_numbers<[1], [0], [0], [1], [0, 0, 1, 1], [], []>} : vector<8x256xf32>, vector<256x128xf32>, vector<8x128xf32> -> vector<8x128xf32>
    %91 = vector.broadcast %8 : vector<1x128xf32> to vector<8x128xf32>
    %92 = arith.addf %90, %91 : vector<8x128xf32>
    %93 = math.tanh %92 : vector<8x128xf32>
    %cst_43 = arith.constant dense<0.000000e+00> : vector<8x128xf32>
    %94 = tpu.matmul %93, %5, %cst_43 {dimension_numbers = #tpu.dot_dimension_numbers<[1], [0], [0], [1], [0, 0, 1, 1], [], []>} : vector<8x128xf32>, vector<128x128xf32>, vector<8x128xf32> -> vector<8x128xf32>
    %95 = vector.broadcast %9 : vector<1x128xf32> to vector<8x128xf32>
    %96 = arith.addf %94, %95 : vector<8x128xf32>
    %97 = tpu.concatenate %93, %96 in 1 : vector<8x128xf32>, vector<8x128xf32> -> vector<8x256xf32>
    %c4_44 = arith.constant 4 : index
    %c0_45 = arith.constant 0 : index
    %c0_46 = arith.constant 0 : index
    %98 = vector.load %arg4[%c4_44, %c0_45, %c0_46] : memref<8x8x256xf32, #tpu.memory_space<vmem>>, vector<1x8x256xf32>
    %99 = vector.shape_cast %98 : vector<1x8x256xf32> to vector<8x256xf32>
    %100 = vector.shape_cast %97 : vector<8x256xf32> to vector<1x8x256xf32>
    tpu.vector_store %arg4[%c4_44, %c0_45, %c0_46], %100 {strides = array<i32>} : memref<8x8x256xf32, #tpu.memory_space<vmem>>, vector<1x8x256xf32>,
    %c5 = arith.constant 5 : index
    %c0_47 = arith.constant 0 : index
    %c0_48 = arith.constant 0 : index
    %101 = vector.load %arg3[%c5, %c0_47, %c0_48] : memref<8x8x128xf32, #tpu.memory_space<vmem>>, vector<1x8x128xf32>
    %102 = vector.shape_cast %101 : vector<1x8x128xf32> to vector<8x128xf32>
    %cst_49 = arith.constant dense<0.000000e+00> : vector<8x128xf32>
    %103 = tpu.matmul %102, %3, %cst_49 {dimension_numbers = #tpu.dot_dimension_numbers<[1], [0], [0], [1], [0, 0, 1, 1], [], []>} : vector<8x128xf32>, vector<128x128xf32>, vector<8x128xf32> -> vector<8x128xf32>
    %104 = vector.broadcast %7 : vector<1x128xf32> to vector<8x128xf32>
    %105 = arith.addf %103, %104 : vector<8x128xf32>
    %106 = math.tanh %105 : vector<8x128xf32>
    %107 = tpu.concatenate %106, %93 in 1 : vector<8x128xf32>, vector<8x128xf32> -> vector<8x256xf32>
    %cst_50 = arith.constant dense<0.000000e+00> : vector<8x128xf32>
    %108 = tpu.matmul %107, %4, %cst_50 {dimension_numbers = #tpu.dot_dimension_numbers<[1], [0], [0], [1], [0, 0, 1, 1], [], []>} : vector<8x256xf32>, vector<256x128xf32>, vector<8x128xf32> -> vector<8x128xf32>
    %109 = vector.broadcast %8 : vector<1x128xf32> to vector<8x128xf32>
    %110 = arith.addf %108, %109 : vector<8x128xf32>
    %111 = math.tanh %110 : vector<8x128xf32>
    %cst_51 = arith.constant dense<0.000000e+00> : vector<8x128xf32>
    %112 = tpu.matmul %111, %5, %cst_51 {dimension_numbers = #tpu.dot_dimension_numbers<[1], [0], [0], [1], [0, 0, 1, 1], [], []>} : vector<8x128xf32>, vector<128x128xf32>, vector<8x128xf32> -> vector<8x128xf32>
    %113 = vector.broadcast %9 : vector<1x128xf32> to vector<8x128xf32>
    %114 = arith.addf %112, %113 : vector<8x128xf32>
    %115 = tpu.concatenate %111, %114 in 1 : vector<8x128xf32>, vector<8x128xf32> -> vector<8x256xf32>
    %c5_52 = arith.constant 5 : index
    %c0_53 = arith.constant 0 : index
    %c0_54 = arith.constant 0 : index
    %116 = vector.load %arg4[%c5_52, %c0_53, %c0_54] : memref<8x8x256xf32, #tpu.memory_space<vmem>>, vector<1x8x256xf32>
    %117 = vector.shape_cast %116 : vector<1x8x256xf32> to vector<8x256xf32>
    %118 = vector.shape_cast %115 : vector<8x256xf32> to vector<1x8x256xf32>
    tpu.vector_store %arg4[%c5_52, %c0_53, %c0_54], %118 {strides = array<i32>} : memref<8x8x256xf32, #tpu.memory_space<vmem>>, vector<1x8x256xf32>,
    %c6 = arith.constant 6 : index
    %c0_55 = arith.constant 0 : index
    %c0_56 = arith.constant 0 : index
    %119 = vector.load %arg3[%c6, %c0_55, %c0_56] : memref<8x8x128xf32, #tpu.memory_space<vmem>>, vector<1x8x128xf32>
    %120 = vector.shape_cast %119 : vector<1x8x128xf32> to vector<8x128xf32>
    %cst_57 = arith.constant dense<0.000000e+00> : vector<8x128xf32>
    %121 = tpu.matmul %120, %3, %cst_57 {dimension_numbers = #tpu.dot_dimension_numbers<[1], [0], [0], [1], [0, 0, 1, 1], [], []>} : vector<8x128xf32>, vector<128x128xf32>, vector<8x128xf32> -> vector<8x128xf32>
    %122 = vector.broadcast %7 : vector<1x128xf32> to vector<8x128xf32>
    %123 = arith.addf %121, %122 : vector<8x128xf32>
    %124 = math.tanh %123 : vector<8x128xf32>
    %125 = tpu.concatenate %124, %111 in 1 : vector<8x128xf32>, vector<8x128xf32> -> vector<8x256xf32>
    %cst_58 = arith.constant dense<0.000000e+00> : vector<8x128xf32>
    %126 = tpu.matmul %125, %4, %cst_58 {dimension_numbers = #tpu.dot_dimension_numbers<[1], [0], [0], [1], [0, 0, 1, 1], [], []>} : vector<8x256xf32>, vector<256x128xf32>, vector<8x128xf32> -> vector<8x128xf32>
    %127 = vector.broadcast %8 : vector<1x128xf32> to vector<8x128xf32>
    %128 = arith.addf %126, %127 : vector<8x128xf32>
    %129 = math.tanh %128 : vector<8x128xf32>
    %cst_59 = arith.constant dense<0.000000e+00> : vector<8x128xf32>
    %130 = tpu.matmul %129, %5, %cst_59 {dimension_numbers = #tpu.dot_dimension_numbers<[1], [0], [0], [1], [0, 0, 1, 1], [], []>} : vector<8x128xf32>, vector<128x128xf32>, vector<8x128xf32> -> vector<8x128xf32>
    %131 = vector.broadcast %9 : vector<1x128xf32> to vector<8x128xf32>
    %132 = arith.addf %130, %131 : vector<8x128xf32>
    %133 = tpu.concatenate %129, %132 in 1 : vector<8x128xf32>, vector<8x128xf32> -> vector<8x256xf32>
    %c6_60 = arith.constant 6 : index
    %c0_61 = arith.constant 0 : index
    %c0_62 = arith.constant 0 : index
    %134 = vector.load %arg4[%c6_60, %c0_61, %c0_62] : memref<8x8x256xf32, #tpu.memory_space<vmem>>, vector<1x8x256xf32>
    %135 = vector.shape_cast %134 : vector<1x8x256xf32> to vector<8x256xf32>
    %136 = vector.shape_cast %133 : vector<8x256xf32> to vector<1x8x256xf32>
    tpu.vector_store %arg4[%c6_60, %c0_61, %c0_62], %136 {strides = array<i32>} : memref<8x8x256xf32, #tpu.memory_space<vmem>>, vector<1x8x256xf32>,
    %c7 = arith.constant 7 : index
    %c0_63 = arith.constant 0 : index
    %c0_64 = arith.constant 0 : index
    %137 = vector.load %arg3[%c7, %c0_63, %c0_64] : memref<8x8x128xf32, #tpu.memory_space<vmem>>, vector<1x8x128xf32>
    %138 = vector.shape_cast %137 : vector<1x8x128xf32> to vector<8x128xf32>
    %cst_65 = arith.constant dense<0.000000e+00> : vector<8x128xf32>
    %139 = tpu.matmul %138, %3, %cst_65 {dimension_numbers = #tpu.dot_dimension_numbers<[1], [0], [0], [1], [0, 0, 1, 1], [], []>} : vector<8x128xf32>, vector<128x128xf32>, vector<8x128xf32> -> vector<8x128xf32>
    %140 = vector.broadcast %7 : vector<1x128xf32> to vector<8x128xf32>
    %141 = arith.addf %139, %140 : vector<8x128xf32>
    %142 = math.tanh %141 : vector<8x128xf32>
    %143 = tpu.concatenate %142, %129 in 1 : vector<8x128xf32>, vector<8x128xf32> -> vector<8x256xf32>
    %cst_66 = arith.constant dense<0.000000e+00> : vector<8x128xf32>
    %144 = tpu.matmul %143, %4, %cst_66 {dimension_numbers = #tpu.dot_dimension_numbers<[1], [0], [0], [1], [0, 0, 1, 1], [], []>} : vector<8x256xf32>, vector<256x128xf32>, vector<8x128xf32> -> vector<8x128xf32>
    %145 = vector.broadcast %8 : vector<1x128xf32> to vector<8x128xf32>
    %146 = arith.addf %144, %145 : vector<8x128xf32>
    %147 = math.tanh %146 : vector<8x128xf32>
    %cst_67 = arith.constant dense<0.000000e+00> : vector<8x128xf32>
    %148 = tpu.matmul %147, %5, %cst_67 {dimension_numbers = #tpu.dot_dimension_numbers<[1], [0], [0], [1], [0, 0, 1, 1], [], []>} : vector<8x128xf32>, vector<128x128xf32>, vector<8x128xf32> -> vector<8x128xf32>
    %149 = vector.broadcast %9 : vector<1x128xf32> to vector<8x128xf32>
    %150 = arith.addf %148, %149 : vector<8x128xf32>
    %151 = tpu.concatenate %147, %150 in 1 : vector<8x128xf32>, vector<8x128xf32> -> vector<8x256xf32>
    %c7_68 = arith.constant 7 : index
    %c0_69 = arith.constant 0 : index
    %c0_70 = arith.constant 0 : index
    %152 = vector.load %arg4[%c7_68, %c0_69, %c0_70] : memref<8x8x256xf32, #tpu.memory_space<vmem>>, vector<1x8x256xf32>
    %153 = vector.shape_cast %152 : vector<1x8x256xf32> to vector<8x256xf32>
    %154 = vector.shape_cast %151 : vector<8x256xf32> to vector<1x8x256xf32>
    tpu.vector_store %arg4[%c7_68, %c0_69, %c0_70], %154 {strides = array<i32>} : memref<8x8x256xf32, #tpu.memory_space<vmem>>, vector<1x8x256xf32>,
    %c0_71 = arith.constant 0 : index
    %c0_72 = arith.constant 0 : index
    %155 = vector.load %arg5[%c0_71, %c0_72] : memref<8x128xf32, #tpu.memory_space<vmem>>, vector<8x128xf32>
    tpu.vector_store %arg5[%c0_71, %c0_72], %147 {strides = array<i32>} : memref<8x128xf32, #tpu.memory_space<vmem>>, vector<8x128xf32>,
    return
  }
  func.func @transform_0(%arg0: i32) -> (i32, i32) {
    %c0_i32 = arith.constant 0 : i32
    %c0_i32_0 = arith.constant 0 : i32
    %c0_i32_1 = arith.constant 0 : i32
    return %c0_i32, %c0_i32_0 : i32, i32
  }
  func.func @transform_1(%arg0: i32) -> (i32, i32) {
    %c0_i32 = arith.constant 0 : i32
    %c0_i32_0 = arith.constant 0 : i32
    %c0_i32_1 = arith.constant 0 : i32
    return %c0_i32, %c0_i32_0 : i32, i32
  }
  func.func @transform_2(%arg0: i32) -> (i32, i32, i32) {
    %c0_i32 = arith.constant 0 : i32
    %c0_i32_0 = arith.constant 0 : i32
    %c0_i32_1 = arith.constant 0 : i32
    return %arg0, %c0_i32, %c0_i32_0 : i32, i32, i32
  }
  func.func @transform_3(%arg0: i32) -> (i32, i32, i32) {
    %c0_i32 = arith.constant 0 : i32
    %c0_i32_0 = arith.constant 0 : i32
    %c0_i32_1 = arith.constant 0 : i32
    return %arg0, %c0_i32, %c0_i32_0 : i32, i32, i32
  }
}

</mosaic_0001>

<llo_original>
// kernel: tpu_custom_call.1
$region0: #{tpu_custom_call.1}
  #allocation0 [shape = 'u32[]', space=smem, size = 0x4, offset = 0x4, fixed_abs, tag = 'smem constant byte address 0x4 - core index']
  #allocation1 [shape = 'u32[72,128]{1,0:T(1,128)}', space=vmem, size = 0x9000, scoped, tag = 'internal scratch']
  #allocation2 [shape = 'f32[8,128]{1,0:T(8,128)}', space=vmem, size = 0x1000, scoped, tag = 'scratch operand']
  %s0 = inlined_call_operand.hbm [shape: f32[8,128], index: 0, kind: input, shape index: {}]
  %s1 = inlined_call_operand.hbm [shape: f32[520,128], index: 1, kind: input, shape index: {}]
  %s2 = inlined_call_operand.hbm [shape: f32[8,8,128], index: 2, kind: input, shape index: {}]
  %s3 = inlined_call_operand.hbm [shape: f32[8,8,256], index: 3, kind: output, shape index: {}]
  %s4 = sld [smem:[#allocation0]]
  $region38: #{tpu_custom_call.1} parent=0
    _
  %s6 = ssub.s32 1, %s4
  %s7 = scalar_select 0, %s6, %s4
  $region1: #{tpu_custom_call.1} parent=0
    #allocation3 [shape = 'u8[4096]{0}', space=vmem, size = 0x1000, scoped, tag = 'input window, operand 0, single buffered']
    #allocation4 [shape = 's32[1]{0}', space=sflag, size = 0x4, scoped, tag = 'scoped memory for tpu_custom_call.1']
    #allocation5 [shape = 's32[1]{0}', space=sflag, size = 0x4, scoped, tag = 'scoped memory for tpu_custom_call.1']
    #allocation6 [shape = 'u8[266240]{0}', space=vmem, size = 0x41000, scoped, tag = 'input window, operand 1, single buffered']
    #allocation7 [shape = 's32[1]{0}', space=sflag, size = 0x4, scoped, tag = 'scoped memory for tpu_custom_call.1']
    #allocation8 [shape = 'u8[32768]{0}', space=vmem, size = 0x8000, scoped, tag = 'input window, operand 2, single buffered']
    #allocation9 [shape = 'u8[65536]{0}', space=vmem, size = 0x10000, scoped, tag = 'output window, operand 0, single buffered']
    %8 = vsyncpa [#allocation4], 0
    %9 = vsyncpa [#allocation7], 0
    %10 = vsyncpa [#allocation5], 0
    // Predicated region
    $region2: #{tpu_custom_call.1} parent=1 // pred_check
      _
    $region3: #{tpu_custom_call.1} parent=1 // pred_check_branch
      %12 = sbr.rel (0) target = $region5
    $region4: #{tpu_custom_call.1} parent=1 // pred_region
      %14 = vsyncadd [#allocation4], 0
      %s16 = sshll.u32 %s0, 4
      %s17 = int_to_ptr.hbm [resolvable:$true] %s16
      %s18 = sshll.u32 [#allocation3], 4
      %s19 = int_to_ptr.vmem [resolvable:$true] %s18
      %21 = dma.hbm_to_vmem [thread:$0]  %s17, 128, %s19, [#allocation4]
    $region5: #{tpu_custom_call.1} parent=1 // pred_fallthru
      _
    // Predicated region
    $region6: #{tpu_custom_call.1} parent=1 // pred_check
      _
    $region7: #{tpu_custom_call.1} parent=1 // pred_check_branch
      %23 = sbr.rel (0) target = $region9
    $region8: #{tpu_custom_call.1} parent=1 // pred_region
      %25 = vsyncadd [#allocation7], 0
      %s26 = sshll.u32 %s1, 4
      %s27 = int_to_ptr.hbm [resolvable:$true] %s26
      %s28 = sshll.u32 [#allocation6], 4
      %s29 = int_to_ptr.vmem [resolvable:$true] %s28
      %34 = dma.hbm_to_vmem [thread:$0]  %s27, 8320, %s29, [#allocation7], 128, 128, 8
    $region9: #{tpu_custom_call.1} parent=1 // pred_fallthru
      _
    // Predicated region
    $region10: #{tpu_custom_call.1} parent=1 // pred_check
      _
    $region11: #{tpu_custom_call.1} parent=1 // pred_check_branch
      %36 = sbr.rel (0) target = $region13
    $region12: #{tpu_custom_call.1} parent=1 // pred_region
      %38 = vsyncadd [#allocation7], 0
      %s39 = sshll.u32 %s2, 4
      %s40 = int_to_ptr.hbm [resolvable:$true] %s39
      %s41 = sshll.u32 [#allocation8], 4
      %s42 = int_to_ptr.vmem [resolvable:$true] %s41
      %47 = dma.hbm_to_vmem [thread:$0]  %s40, 1024, %s42, [#allocation7], 128, 128, 8
    $region13: #{tpu_custom_call.1} parent=1 // pred_fallthru
      _
    // Predicated region
    $region14: #{tpu_custom_call.1} parent=1 // pred_check
      _
    $region15: #{tpu_custom_call.1} parent=1 // pred_check_branch
      %49 = sbr.rel (0) target = $region17
    $region16: #{tpu_custom_call.1} parent=1 // pred_region
      %51 = dma.done [#allocation4], 128
    $region17: #{tpu_custom_call.1} parent=1 // pred_fallthru
      _
    // Predicated region
    $region18: #{tpu_custom_call.1} parent=1 // pred_check
      _
    $region19: #{tpu_custom_call.1} parent=1 // pred_check_branch
      %53 = sbr.rel (0) target = $region21
    $region20: #{tpu_custom_call.1} parent=1 // pred_region
      %55 = dma.done [#allocation7], 8320
    $region21: #{tpu_custom_call.1} parent=1 // pred_fallthru
      _
    // Predicated region
    $region22: #{tpu_custom_call.1} parent=1 // pred_check
      _
    $region23: #{tpu_custom_call.1} parent=1 // pred_check_branch
      %57 = sbr.rel (0) target = $region25
    $region24: #{tpu_custom_call.1} parent=1 // pred_region
      %59 = dma.done [#allocation7], 1024
    $region25: #{tpu_custom_call.1} parent=1 // pred_fallthru
      _
    %p60 = scmp.eq.s32.totalorder 0, 0
    // Predicated region
    $region26: #{tpu_custom_call.1} parent=1 // pred_check
      %p61 = pneg %p60
    $region27: #{tpu_custom_call.1} parent=1 // pred_check_branch
      %63 = sbr.rel (%p61) target = $region29
    $region28: #{tpu_custom_call.1} parent=1 // pred_region
      %v64 = vld [vmem:[#allocation3] sm:$0xff]
      %65 = vst [vmem:[#allocation2] sm:$0xff] %v64
    $region29: #{tpu_custom_call.1} parent=1 // pred_fallthru
      _
    %v66 = vld [vmem:[#allocation6] sm:$0xff]
    %v67 = vld [vmem:[#allocation6 + $0x8] sm:$0xff]
    %v68 = vld [vmem:[#allocation6 + $0x10] sm:$0xff]
    %v69 = vld [vmem:[#allocation6 + $0x18] sm:$0xff]
    %v70 = vld [vmem:[#allocation6 + $0x20] sm:$0xff]
    %v71 = vld [vmem:[#allocation6 + $0x28] sm:$0xff]
    %v72 = vld [vmem:[#allocation6 + $0x30] sm:$0xff]
    %v73 = vld [vmem:[#allocation6 + $0x38] sm:$0xff]
    %v74 = vld [vmem:[#allocation6 + $0x40] sm:$0xff]
    %v75 = vld [vmem:[#allocation6 + $0x48] sm:$0xff]
    %v76 = vld [vmem:[#allocation6 + $0x50] sm:$0xff]
    %v77 = vld [vmem:[#allocation6 + $0x58] sm:$0xff]
    %v78 = vld [vmem:[#allocation6 + $0x60] sm:$0xff]
    %v79 = vld [vmem:[#allocation6 + $0x68] sm:$0xff]
    %v80 = vld [vmem:[#allocation6 + $0x70] sm:$0xff]
    %v81 = vld [vmem:[#allocation6 + $0x78] sm:$0xff]
    %v82 = vld [vmem:[#allocation6 + $0x80] sm:$0xff]
    %v83 = vld [vmem:[#allocation6 + $0x88] sm:$0xff]
    %v84 = vld [vmem:[#allocation6 + $0x90] sm:$0xff]
    %v85 = vld [vmem:[#allocation6 + $0x98] sm:$0xff]
    %v86 = vld [vmem:[#allocation6 + $0xa0] sm:$0xff]
    %v87 = vld [vmem:[#allocation6 + $0xa8] sm:$0xff]
    %v88 = vld [vmem:[#allocation6 + $0xb0] sm:$0xff]
    %v89 = vld [vmem:[#allocation6 + $0xb8] sm:$0xff]
    %v90 = vld [vmem:[#allocation6 + $0xc0] sm:$0xff]
    %v91 = vld [vmem:[#allocation6 + $0xc8] sm:$0xff]
    %v92 = vld [vmem:[#allocation6 + $0xd0] sm:$0xff]
    %v93 = vld [vmem:[#allocation6 + $0xd8] sm:$0xff]
    %v94 = vld [vmem:[#allocation6 + $0xe0] sm:$0xff]
    %v95 = vld [vmem:[#allocation6 + $0xe8] sm:$0xff]
    %v96 = vld [vmem:[#allocation6 + $0xf0] sm:$0xff]
    %v97 = vld [vmem:[#allocation6 + $0xf8] sm:$0xff]
    %v98 = vld [vmem:[#allocation6 + $0x100] sm:$0xff]
    %v99 = vld [vmem:[#allocation6 + $0x108] sm:$0xff]
    %v100 = vld [vmem:[#allocation6 + $0x110] sm:$0xff]
    %v101 = vld [vmem:[#allocation6 + $0x118] sm:$0xff]
    %v102 = vld [vmem:[#allocation6 + $0x120] sm:$0xff]
    %v103 = vld [vmem:[#allocation6 + $0x128] sm:$0xff]
    %v104 = vld [vmem:[#allocation6 + $0x130] sm:$0xff]
    %v105 = vld [vmem:[#allocation6 + $0x138] sm:$0xff]
    %v106 = vld [vmem:[#allocation6 + $0x140] sm:$0xff]
    %v107 = vld [vmem:[#allocation6 + $0x148] sm:$0xff]
    %v108 = vld [vmem:[#allocation6 + $0x150] sm:$0xff]
    %v109 = vld [vmem:[#allocation6 + $0x158] sm:$0xff]
    %v110 = vld [vmem:[#allocation6 + $0x160] sm:$0xff]
    %v111 = vld [vmem:[#allocation6 + $0x168] sm:$0xff]
    %v112 = vld [vmem:[#allocation6 + $0x170] sm:$0xff]
    %v113 = vld [vmem:[#allocation6 + $0x178] sm:$0xff]
    %v114 = vld [vmem:[#allocation6 + $0x180] sm:$0xff]
    %v115 = vld [vmem:[#allocation6 + $0x188] sm:$0xff]
    %v116 = vld [vmem:[#allocation6 + $0x190] sm:$0xff]
    %v117 = vld [vmem:[#allocation6 + $0x198] sm:$0xff]
    %v118 = vld [vmem:[#allocation6 + $0x1a0] sm:$0xff]
    %v119 = vld [vmem:[#allocation6 + $0x1a8] sm:$0xff]
    %v120 = vld [vmem:[#allocation6 + $0x1b0] sm:$0xff]
    %v121 = vld [vmem:[#allocation6 + $0x1b8] sm:$0xff]
    %v122 = vld [vmem:[#allocation6 + $0x1c0] sm:$0xff]
    %v123 = vld [vmem:[#allocation6 + $0x1c8] sm:$0xff]
    %v124 = vld [vmem:[#allocation6 + $0x1d0] sm:$0xff]
    %v125 = vld [vmem:[#allocation6 + $0x1d8] sm:$0xff]
    %v126 = vld [vmem:[#allocation6 + $0x1e0] sm:$0xff]
    %v127 = vld [vmem:[#allocation6 + $0x1e8] sm:$0xff]
    %v128 = vld [vmem:[#allocation6 + $0x1f0] sm:$0xff]
    %v129 = vld [vmem:[#allocation6 + $0x1f8] sm:$0xff]
    %v130 = vld [vmem:[#allocation6 + $0x200] sm:$0xff]
    %v131 = vld [vmem:[#allocation2] sm:$0xff]
    %v132 = vld [vmem:[#allocation8] sm:$0xff]
    %v133 = vperm.slane %v130, 0
    %134 = vmatpush.msra.mxu0 %v81
    %135 = vmatpush.msra.mxu0 %v80
    %136 = vmatpush.msra.mxu0 %v79
    %137 = vmatpush.msra.mxu0 %v78
    %138 = vmatpush.msra.mxu0 %v77
    %139 = vmatpush.msra.mxu0 %v76
    %140 = vmatpush.msra.mxu0 %v75
    %141 = vmatpush.msra.mxu0 %v74
    %142 = vmatpush.msra.mxu0 %v73
    %143 = vmatpush.msra.mxu0 %v72
    %144 = vmatpush.msra.mxu0 %v71
    %145 = vmatpush.msra.mxu0 %v70
    %146 = vmatpush.msra.mxu0 %v69
    %147 = vmatpush.msra.mxu0 %v68
    %148 = vmatpush.msra.mxu0 %v67
    %149 = vmatpush.msra.mxu0 %v66
    %150 = vmatmul.f32.gmra.mxu0 %v132
    %v151 = vpop.f32.mrf.mxu0
    %v152 = vadd.f32 %v133, %v151
    %153 = vdwg.mxu0
    %v154 = vtanh.pop %v152
    %v155 = vperm.slane %v130, 1
    %156 = vmatpush.msra.mxu0 %v97
    %157 = vmatpush.msra.mxu0 %v96
    %158 = vmatpush.msra.mxu0 %v95
    %159 = vmatpush.msra.mxu0 %v94
    %160 = vmatpush.msra.mxu0 %v93
    %161 = vmatpush.msra.mxu0 %v92
    %162 = vmatpush.msra.mxu0 %v91
    %163 = vmatpush.msra.mxu0 %v90
    %164 = vmatpush.msra.mxu0 %v89
    %165 = vmatpush.msra.mxu0 %v88
    %166 = vmatpush.msra.mxu0 %v87
    %167 = vmatpush.msra.mxu0 %v86
    %168 = vmatpush.msra.mxu0 %v85
    %169 = vmatpush.msra.mxu0 %v84
    %170 = vmatpush.msra.mxu0 %v83
    %171 = vmatpush.msra.mxu0 %v82
    %172 = vmatmul.f32.gmra.mxu0 %v154
    %v173 = vpop.f32.mrf.mxu0
    %v174 = vadd.f32 %v155, %v173
    %175 = vdwg.mxu0
    %176 = vmatpush.msra.mxu0 %v113
    %177 = vmatpush.msra.mxu0 %v112
    %178 = vmatpush.msra.mxu0 %v111
    %179 = vmatpush.msra.mxu0 %v110
    %180 = vmatpush.msra.mxu0 %v109
    %181 = vmatpush.msra.mxu0 %v108
    %182 = vmatpush.msra.mxu0 %v107
    %183 = vmatpush.msra.mxu0 %v106
    %184 = vmatpush.msra.mxu0 %v105
    %185 = vmatpush.msra.mxu0 %v104
    %186 = vmatpush.msra.mxu0 %v103
    %187 = vmatpush.msra.mxu0 %v102
    %188 = vmatpush.msra.mxu0 %v101
    %189 = vmatpush.msra.mxu0 %v100
    %190 = vmatpush.msra.mxu0 %v99
    %191 = vmatpush.msra.mxu0 %v98
    %192 = vmatmul.f32.gmra.mxu0 %v131
    %v193 = vpop.f32.mrf.mxu0
    %v194 = vadd.f32 %v174, %v193
    %195 = vdwg.mxu0
    %v196 = vtanh.pop %v194
    %v197 = vperm.slane %v130, 2
    %198 = vmatpush.msra.mxu0 %v129
    %199 = vmatpush.msra.mxu0 %v128
    %200 = vmatpush.msra.mxu0 %v127
    %201 = vmatpush.msra.mxu0 %v126
    %202 = vmatpush.msra.mxu0 %v125
    %203 = vmatpush.msra.mxu0 %v124
    %204 = vmatpush.msra.mxu0 %v123
    %205 = vmatpush.msra.mxu0 %v122
    %206 = vmatpush.msra.mxu0 %v121
    %207 = vmatpush.msra.mxu0 %v120
    %208 = vmatpush.msra.mxu0 %v119
    %209 = vmatpush.msra.mxu0 %v118
    %210 = vmatpush.msra.mxu0 %v117
    %211 = vmatpush.msra.mxu0 %v116
    %212 = vmatpush.msra.mxu0 %v115
    %213 = vmatpush.msra.mxu0 %v114
    %214 = vmatmul.f32.gmra.mxu0 %v196
    %v215 = vpop.f32.mrf.mxu0
    %v216 = vadd.f32 %v197, %v215
    %217 = vdwg.mxu0
    %218 = vst [vmem:[#allocation9] sm:$0xff] %v196
    %219 = vst [vmem:[#allocation9 + $0x8] sm:$0xff] %v216
    %s220 = scalar_lea.vmem [#allocation8], 8
    %v221 = vld [vmem:[%s220] sm:$0xff]
    %222 = vmatpush.msra.mxu0 %v81
    %223 = vmatpush.msra.mxu0 %v80
    %224 = vmatpush.msra.mxu0 %v79
    %225 = vmatpush.msra.mxu0 %v78
    %226 = vmatpush.msra.mxu0 %v77
    %227 = vmatpush.msra.mxu0 %v76
    %228 = vmatpush.msra.mxu0 %v75
    %229 = vmatpush.msra.mxu0 %v74
    %230 = vmatpush.msra.mxu0 %v73
    %231 = vmatpush.msra.mxu0 %v72
    %232 = vmatpush.msra.mxu0 %v71
    %233 = vmatpush.msra.mxu0 %v70
    %234 = vmatpush.msra.mxu0 %v69
    %235 = vmatpush.msra.mxu0 %v68
    %236 = vmatpush.msra.mxu0 %v67
    %237 = vmatpush.msra.mxu0 %v66
    %238 = vmatmul.f32.gmra.mxu0 %v221
    %v239 = vpop.f32.mrf.mxu0
    %v240 = vadd.f32 %v133, %v239
    %241 = vdwg.mxu0
    %v242 = vtanh.pop %v240
    %243 = vmatpush.msra.mxu0 %v97
    %244 = vmatpush.msra.mxu0 %v96
    %245 = vmatpush.msra.mxu0 %v95
    %246 = vmatpush.msra.mxu0 %v94
    %247 = vmatpush.msra.mxu0 %v93
    %248 = vmatpush.msra.mxu0 %v92
    %249 = vmatpush.msra.mxu0 %v91
    %250 = vmatpush.msra.mxu0 %v90
    %251 = vmatpush.msra.mxu0 %v89
    %252 = vmatpush.msra.mxu0 %v88
    %253 = vmatpush.msra.mxu0 %v87
    %254 = vmatpush.msra.mxu0 %v86
    %255 = vmatpush.msra.mxu0 %v85
    %256 = vmatpush.msra.mxu0 %v84
    %257 = vmatpush.msra.mxu0 %v83
    %258 = vmatpush.msra.mxu0 %v82
    %259 = vmatmul.f32.gmra.mxu0 %v242
    %v260 = vpop.f32.mrf.mxu0
    %v261 = vadd.f32 %v155, %v260
    %262 = vdwg.mxu0
    %263 = vmatpush.msra.mxu0 %v113
    %264 = vmatpush.msra.mxu0 %v112
    %265 = vmatpush.msra.mxu0 %v111
    %266 = vmatpush.msra.mxu0 %v110
    %267 = vmatpush.msra.mxu0 %v109
    %268 = vmatpush.msra.mxu0 %v108
    %269 = vmatpush.msra.mxu0 %v107
    %270 = vmatpush.msra.mxu0 %v106
    %271 = vmatpush.msra.mxu0 %v105
    %272 = vmatpush.msra.mxu0 %v104
    %273 = vmatpush.msra.mxu0 %v103
    %274 = vmatpush.msra.mxu0 %v102
    %275 = vmatpush.msra.mxu0 %v101
    %276 = vmatpush.msra.mxu0 %v100
    %277 = vmatpush.msra.mxu0 %v99
    %278 = vmatpush.msra.mxu0 %v98
    %279 = vmatmul.f32.gmra.mxu0 %v196
    %v280 = vpop.f32.mrf.mxu0
    %v281 = vadd.f32 %v261, %v280
    %282 = vdwg.mxu0
    %v283 = vtanh.pop %v281
    %284 = vmatpush.msra.mxu0 %v129
    %285 = vmatpush.msra.mxu0 %v128
    %286 = vmatpush.msra.mxu0 %v127
    %287 = vmatpush.msra.mxu0 %v126
    %288 = vmatpush.msra.mxu0 %v125
    %289 = vmatpush.msra.mxu0 %v124
    %290 = vmatpush.msra.mxu0 %v123
    %291 = vmatpush.msra.mxu0 %v122
    %292 = vmatpush.msra.mxu0 %v121
    %293 = vmatpush.msra.mxu0 %v120
    %294 = vmatpush.msra.mxu0 %v119
    %295 = vmatpush.msra.mxu0 %v118
    %296 = vmatpush.msra.mxu0 %v117
    %297 = vmatpush.msra.mxu0 %v116
    %298 = vmatpush.msra.mxu0 %v115
    %299 = vmatpush.msra.mxu0 %v114
    %300 = vmatmul.f32.gmra.mxu0 %v283
    %v301 = vpop.f32.mrf.mxu0
    %v302 = vadd.f32 %v197, %v301
    %303 = vdwg.mxu0
    %s304 = scalar_lea.vmem [#allocation9], 16
    %305 = vst [vmem:[%s304] sm:$0xff] %v283
    %306 = vst [vmem:[%s304 + $0x8] sm:$0xff] %v302
    %s307 = scalar_lea.vmem [#allocation8], 16
    %v308 = vld [vmem:[%s307] sm:$0xff]
    %309 = vmatpush.msra.mxu0 %v81
    %310 = vmatpush.msra.mxu0 %v80
    %311 = vmatpush.msra.mxu0 %v79
    %312 = vmatpush.msra.mxu0 %v78
    %313 = vmatpush.msra.mxu0 %v77
    %314 = vmatpush.msra.mxu0 %v76
    %315 = vmatpush.msra.mxu0 %v75
    %316 = vmatpush.msra.mxu0 %v74
    %317 = vmatpush.msra.mxu0 %v73
    %318 = vmatpush.msra.mxu0 %v72
    %319 = vmatpush.msra.mxu0 %v71
    %320 = vmatpush.msra.mxu0 %v70
    %321 = vmatpush.msra.mxu0 %v69
    %322 = vmatpush.msra.mxu0 %v68
    %323 = vmatpush.msra.mxu0 %v67
    %324 = vmatpush.msra.mxu0 %v66
    %325 = vmatmul.f32.gmra.mxu0 %v308
    %v326 = vpop.f32.mrf.mxu0
    %v327 = vadd.f32 %v133, %v326
    %328 = vdwg.mxu0
    %v329 = vtanh.pop %v327
    %330 = vmatpush.msra.mxu0 %v97
    %331 = vmatpush.msra.mxu0 %v96
    %332 = vmatpush.msra.mxu0 %v95
    %333 = vmatpush.msra.mxu0 %v94
    %334 = vmatpush.msra.mxu0 %v93
    %335 = vmatpush.msra.mxu0 %v92
    %336 = vmatpush.msra.mxu0 %v91
    %337 = vmatpush.msra.mxu0 %v90
    %338 = vmatpush.msra.mxu0 %v89
    %339 = vmatpush.msra.mxu0 %v88
    %340 = vmatpush.msra.mxu0 %v87
    %341 = vmatpush.msra.mxu0 %v86
    %342 = vmatpush.msra.mxu0 %v85
    %343 = vmatpush.msra.mxu0 %v84
    %344 = vmatpush.msra.mxu0 %v83
    %345 = vmatpush.msra.mxu0 %v82
    %346 = vmatmul.f32.gmra.mxu0 %v329
    %v347 = vpop.f32.mrf.mxu0
    %v348 = vadd.f32 %v155, %v347
    %349 = vdwg.mxu0
    %350 = vmatpush.msra.mxu0 %v113
    %351 = vmatpush.msra.mxu0 %v112
    %352 = vmatpush.msra.mxu0 %v111
    %353 = vmatpush.msra.mxu0 %v110
    %354 = vmatpush.msra.mxu0 %v109
    %355 = vmatpush.msra.mxu0 %v108
    %356 = vmatpush.msra.mxu0 %v107
    %357 = vmatpush.msra.mxu0 %v106
    %358 = vmatpush.msra.mxu0 %v105
    %359 = vmatpush.msra.mxu0 %v104
    %360 = vmatpush.msra.mxu0 %v103
    %361 = vmatpush.msra.mxu0 %v102
    %362 = vmatpush.msra.mxu0 %v101
    %363 = vmatpush.msra.mxu0 %v100
    %364 = vmatpush.msra.mxu0 %v99
    %365 = vmatpush.msra.mxu0 %v98
    %366 = vmatmul.f32.gmra.mxu0 %v283
    %v367 = vpop.f32.mrf.mxu0
    %v368 = vadd.f32 %v348, %v367
    %369 = vdwg.mxu0
    %v370 = vtanh.pop %v368
    %371 = vmatpush.msra.mxu0 %v129
    %372 = vmatpush.msra.mxu0 %v128
    %373 = vmatpush.msra.mxu0 %v127
    %374 = vmatpush.msra.mxu0 %v126
    %375 = vmatpush.msra.mxu0 %v125
    %376 = vmatpush.msra.mxu0 %v124
    %377 = vmatpush.msra.mxu0 %v123
    %378 = vmatpush.msra.mxu0 %v122
    %379 = vmatpush.msra.mxu0 %v121
    %380 = vmatpush.msra.mxu0 %v120
    %381 = vmatpush.msra.mxu0 %v119
    %382 = vmatpush.msra.mxu0 %v118
    %383 = vmatpush.msra.mxu0 %v117
    %384 = vmatpush.msra.mxu0 %v116
    %385 = vmatpush.msra.mxu0 %v115
    %386 = vmatpush.msra.mxu0 %v114
    %387 = vmatmul.f32.gmra.mxu0 %v370
    %v388 = vpop.f32.mrf.mxu0
    %v389 = vadd.f32 %v197, %v388
    %390 = vdwg.mxu0
    %s391 = scalar_lea.vmem [#allocation9], 32
    %392 = vst [vmem:[%s391] sm:$0xff] %v370
    %393 = vst [vmem:[%s391 + $0x8] sm:$0xff] %v389
    %s394 = scalar_lea.vmem [#allocation8], 24
    %v395 = vld [vmem:[%s394] sm:$0xff]
    %396 = vmatpush.msra.mxu0 %v81
    %397 = vmatpush.msra.mxu0 %v80
    %398 = vmatpush.msra.mxu0 %v79
    %399 = vmatpush.msra.mxu0 %v78
    %400 = vmatpush.msra.mxu0 %v77
    %401 = vmatpush.msra.mxu0 %v76
    %402 = vmatpush.msra.mxu0 %v75
    %403 = vmatpush.msra.mxu0 %v74
    %404 = vmatpush.msra.mxu0 %v73
    %405 = vmatpush.msra.mxu0 %v72
    %406 = vmatpush.msra.mxu0 %v71
    %407 = vmatpush.msra.mxu0 %v70
    %408 = vmatpush.msra.mxu0 %v69
    %409 = vmatpush.msra.mxu0 %v68
    %410 = vmatpush.msra.mxu0 %v67
    %411 = vmatpush.msra.mxu0 %v66
    %412 = vmatmul.f32.gmra.mxu0 %v395
    %v413 = vpop.f32.mrf.mxu0
    %v414 = vadd.f32 %v133, %v413
    %415 = vdwg.mxu0
    %v416 = vtanh.pop %v414
    %417 = vmatpush.msra.mxu0 %v97
    %418 = vmatpush.msra.mxu0 %v96
    %419 = vmatpush.msra.mxu0 %v95
    %420 = vmatpush.msra.mxu0 %v94
    %421 = vmatpush.msra.mxu0 %v93
    %422 = vmatpush.msra.mxu0 %v92
    %423 = vmatpush.msra.mxu0 %v91
    %424 = vmatpush.msra.mxu0 %v90
    %425 = vmatpush.msra.mxu0 %v89
    %426 = vmatpush.msra.mxu0 %v88
    %427 = vmatpush.msra.mxu0 %v87
    %428 = vmatpush.msra.mxu0 %v86
    %429 = vmatpush.msra.mxu0 %v85
    %430 = vmatpush.msra.mxu0 %v84
    %431 = vmatpush.msra.mxu0 %v83
    %432 = vmatpush.msra.mxu0 %v82
    %433 = vmatmul.f32.gmra.mxu0 %v416
    %v434 = vpop.f32.mrf.mxu0
    %v435 = vadd.f32 %v155, %v434
    %436 = vdwg.mxu0
    %437 = vmatpush.msra.mxu0 %v113
    %438 = vmatpush.msra.mxu0 %v112
    %439 = vmatpush.msra.mxu0 %v111
    %440 = vmatpush.msra.mxu0 %v110
    %441 = vmatpush.msra.mxu0 %v109
    %442 = vmatpush.msra.mxu0 %v108
    %443 = vmatpush.msra.mxu0 %v107
    %444 = vmatpush.msra.mxu0 %v106
    %445 = vmatpush.msra.mxu0 %v105
    %446 = vmatpush.msra.mxu0 %v104
    %447 = vmatpush.msra.mxu0 %v103
    %448 = vmatpush.msra.mxu0 %v102
    %449 = vmatpush.msra.mxu0 %v101
    %450 = vmatpush.msra.mxu0 %v100
    %451 = vmatpush.msra.mxu0 %v99
    %452 = vmatpush.msra.mxu0 %v98
    %453 = vmatmul.f32.gmra.mxu0 %v370
    %v454 = vpop.f32.mrf.mxu0
    %v455 = vadd.f32 %v435, %v454
    %456 = vdwg.mxu0
    %v457 = vtanh.pop %v455
    %458 = vmatpush.msra.mxu0 %v129
    %459 = vmatpush.msra.mxu0 %v128
    %460 = vmatpush.msra.mxu0 %v127
    %461 = vmatpush.msra.mxu0 %v126
    %462 = vmatpush.msra.mxu0 %v125
    %463 = vmatpush.msra.mxu0 %v124
    %464 = vmatpush.msra.mxu0 %v123
    %465 = vmatpush.msra.mxu0 %v122
    %466 = vmatpush.msra.mxu0 %v121
    %467 = vmatpush.msra.mxu0 %v120
    %468 = vmatpush.msra.mxu0 %v119
    %469 = vmatpush.msra.mxu0 %v118
    %470 = vmatpush.msra.mxu0 %v117
    %471 = vmatpush.msra.mxu0 %v116
    %472 = vmatpush.msra.mxu0 %v115
    %473 = vmatpush.msra.mxu0 %v114
    %474 = vmatmul.f32.gmra.mxu0 %v457
    %v475 = vpop.f32.mrf.mxu0
    %v476 = vadd.f32 %v197, %v475
    %477 = vdwg.mxu0
    %s478 = scalar_lea.vmem [#allocation9], 48
    %479 = vst [vmem:[%s478] sm:$0xff] %v457
    %480 = vst [vmem:[%s478 + $0x8] sm:$0xff] %v476
    %s481 = scalar_lea.vmem [#allocation8], 32
    %v482 = vld [vmem:[%s481] sm:$0xff]
    %483 = vmatpush.msra.mxu0 %v81
    %484 = vmatpush.msra.mxu0 %v80
    %485 = vmatpush.msra.mxu0 %v79
    %486 = vmatpush.msra.mxu0 %v78
    %487 = vmatpush.msra.mxu0 %v77
    %488 = vmatpush.msra.mxu0 %v76
    %489 = vmatpush.msra.mxu0 %v75
    %490 = vmatpush.msra.mxu0 %v74
    %491 = vmatpush.msra.mxu0 %v73
    %492 = vmatpush.msra.mxu0 %v72
    %493 = vmatpush.msra.mxu0 %v71
    %494 = vmatpush.msra.mxu0 %v70
    %495 = vmatpush.msra.mxu0 %v69
    %496 = vmatpush.msra.mxu0 %v68
    %497 = vmatpush.msra.mxu0 %v67
    %498 = vmatpush.msra.mxu0 %v66
    %499 = vmatmul.f32.gmra.mxu0 %v482
    %v500 = vpop.f32.mrf.mxu0
    %v501 = vadd.f32 %v133, %v500
    %502 = vdwg.mxu0
    %v503 = vtanh.pop %v501
    %504 = vmatpush.msra.mxu0 %v97
    %505 = vmatpush.msra.mxu0 %v96
    %506 = vmatpush.msra.mxu0 %v95
    %507 = vmatpush.msra.mxu0 %v94
    %508 = vmatpush.msra.mxu0 %v93
    %509 = vmatpush.msra.mxu0 %v92
    %510 = vmatpush.msra.mxu0 %v91
    %511 = vmatpush.msra.mxu0 %v90
    %512 = vmatpush.msra.mxu0 %v89
    %513 = vmatpush.msra.mxu0 %v88
    %514 = vmatpush.msra.mxu0 %v87
    %515 = vmatpush.msra.mxu0 %v86
    %516 = vmatpush.msra.mxu0 %v85
    %517 = vmatpush.msra.mxu0 %v84
    %518 = vmatpush.msra.mxu0 %v83
    %519 = vmatpush.msra.mxu0 %v82
    %520 = vmatmul.f32.gmra.mxu0 %v503
    %v521 = vpop.f32.mrf.mxu0
    %v522 = vadd.f32 %v155, %v521
    %523 = vdwg.mxu0
    %524 = vmatpush.msra.mxu0 %v113
    %525 = vmatpush.msra.mxu0 %v112
    %526 = vmatpush.msra.mxu0 %v111
    %527 = vmatpush.msra.mxu0 %v110
    %528 = vmatpush.msra.mxu0 %v109
    %529 = vmatpush.msra.mxu0 %v108
    %530 = vmatpush.msra.mxu0 %v107
    %531 = vmatpush.msra.mxu0 %v106
    %532 = vmatpush.msra.mxu0 %v105
    %533 = vmatpush.msra.mxu0 %v104
    %534 = vmatpush.msra.mxu0 %v103
    %535 = vmatpush.msra.mxu0 %v102
    %536 = vmatpush.msra.mxu0 %v101
    %537 = vmatpush.msra.mxu0 %v100
    %538 = vmatpush.msra.mxu0 %v99
    %539 = vmatpush.msra.mxu0 %v98
    %540 = vmatmul.f32.gmra.mxu0 %v457
    %v541 = vpop.f32.mrf.mxu0
    %v542 = vadd.f32 %v522, %v541
    %543 = vdwg.mxu0
    %v544 = vtanh.pop %v542
    %545 = vmatpush.msra.mxu0 %v129
    %546 = vmatpush.msra.mxu0 %v128
    %547 = vmatpush.msra.mxu0 %v127
    %548 = vmatpush.msra.mxu0 %v126
    %549 = vmatpush.msra.mxu0 %v125
    %550 = vmatpush.msra.mxu0 %v124
    %551 = vmatpush.msra.mxu0 %v123
    %552 = vmatpush.msra.mxu0 %v122
    %553 = vmatpush.msra.mxu0 %v121
    %554 = vmatpush.msra.mxu0 %v120
    %555 = vmatpush.msra.mxu0 %v119
    %556 = vmatpush.msra.mxu0 %v118
    %557 = vmatpush.msra.mxu0 %v117
    %558 = vmatpush.msra.mxu0 %v116
    %559 = vmatpush.msra.mxu0 %v115
    %560 = vmatpush.msra.mxu0 %v114
    %561 = vmatmul.f32.gmra.mxu0 %v544
    %v562 = vpop.f32.mrf.mxu0
    %v563 = vadd.f32 %v197, %v562
    %564 = vdwg.mxu0
    %s565 = scalar_lea.vmem [#allocation9], 64
    %566 = vst [vmem:[%s565] sm:$0xff] %v544
    %567 = vst [vmem:[%s565 + $0x8] sm:$0xff] %v563
    %s568 = scalar_lea.vmem [#allocation8], 40
    %v569 = vld [vmem:[%s568] sm:$0xff]
    %570 = vmatpush.msra.mxu0 %v81
    %571 = vmatpush.msra.mxu0 %v80
    %572 = vmatpush.msra.mxu0 %v79
    %573 = vmatpush.msra.mxu0 %v78
    %574 = vmatpush.msra.mxu0 %v77
    %575 = vmatpush.msra.mxu0 %v76
    %576 = vmatpush.msra.mxu0 %v75
    %577 = vmatpush.msra.mxu0 %v74
    %578 = vmatpush.msra.mxu0 %v73
    %579 = vmatpush.msra.mxu0 %v72
    %580 = vmatpush.msra.mxu0 %v71
    %581 = vmatpush.msra.mxu0 %v70
    %582 = vmatpush.msra.mxu0 %v69
    %583 = vmatpush.msra.mxu0 %v68
    %584 = vmatpush.msra.mxu0 %v67
    %585 = vmatpush.msra.mxu0 %v66
    %586 = vmatmul.f32.gmra.mxu0 %v569
    %v587 = vpop.f32.mrf.mxu0
    %v588 = vadd.f32 %v133, %v587
    %589 = vdwg.mxu0
    %v590 = vtanh.pop %v588
    %591 = vmatpush.msra.mxu0 %v97
    %592 = vmatpush.msra.mxu0 %v96
    %593 = vmatpush.msra.mxu0 %v95
    %594 = vmatpush.msra.mxu0 %v94
    %595 = vmatpush.msra.mxu0 %v93
    %596 = vmatpush.msra.mxu0 %v92
    %597 = vmatpush.msra.mxu0 %v91
    %598 = vmatpush.msra.mxu0 %v90
    %599 = vmatpush.msra.mxu0 %v89
    %600 = vmatpush.msra.mxu0 %v88
    %601 = vmatpush.msra.mxu0 %v87
    %602 = vmatpush.msra.mxu0 %v86
    %603 = vmatpush.msra.mxu0 %v85
    %604 = vmatpush.msra.mxu0 %v84
    %605 = vmatpush.msra.mxu0 %v83
    %606 = vmatpush.msra.mxu0 %v82
    %607 = vmatmul.f32.gmra.mxu0 %v590
    %v608 = vpop.f32.mrf.mxu0
    %v609 = vadd.f32 %v155, %v608
    %610 = vdwg.mxu0
    %611 = vmatpush.msra.mxu0 %v113
    %612 = vmatpush.msra.mxu0 %v112
    %613 = vmatpush.msra.mxu0 %v111
    %614 = vmatpush.msra.mxu0 %v110
    %615 = vmatpush.msra.mxu0 %v109
    %616 = vmatpush.msra.mxu0 %v108
    %617 = vmatpush.msra.mxu0 %v107
    %618 = vmatpush.msra.mxu0 %v106
    %619 = vmatpush.msra.mxu0 %v105
    %620 = vmatpush.msra.mxu0 %v104
    %621 = vmatpush.msra.mxu0 %v103
    %622 = vmatpush.msra.mxu0 %v102
    %623 = vmatpush.msra.mxu0 %v101
    %624 = vmatpush.msra.mxu0 %v100
    %625 = vmatpush.msra.mxu0 %v99
    %626 = vmatpush.msra.mxu0 %v98
    %627 = vmatmul.f32.gmra.mxu0 %v544
    %v628 = vpop.f32.mrf.mxu0
    %v629 = vadd.f32 %v609, %v628
    %630 = vdwg.mxu0
    %v631 = vtanh.pop %v629
    %632 = vmatpush.msra.mxu0 %v129
    %633 = vmatpush.msra.mxu0 %v128
    %634 = vmatpush.msra.mxu0 %v127
    %635 = vmatpush.msra.mxu0 %v126
    %636 = vmatpush.msra.mxu0 %v125
    %637 = vmatpush.msra.mxu0 %v124
    %638 = vmatpush.msra.mxu0 %v123
    %639 = vmatpush.msra.mxu0 %v122
    %640 = vmatpush.msra.mxu0 %v121
    %641 = vmatpush.msra.mxu0 %v120
    %642 = vmatpush.msra.mxu0 %v119
    %643 = vmatpush.msra.mxu0 %v118
    %644 = vmatpush.msra.mxu0 %v117
    %645 = vmatpush.msra.mxu0 %v116
    %646 = vmatpush.msra.mxu0 %v115
    %647 = vmatpush.msra.mxu0 %v114
    %648 = vmatmul.f32.gmra.mxu0 %v631
    %v649 = vpop.f32.mrf.mxu0
    %v650 = vadd.f32 %v197, %v649
    %651 = vdwg.mxu0
    %s652 = scalar_lea.vmem [#allocation9], 80
    %653 = vst [vmem:[%s652] sm:$0xff] %v631
    %654 = vst [vmem:[%s652 + $0x8] sm:$0xff] %v650
    %s655 = scalar_lea.vmem [#allocation8], 48
    %v656 = vld [vmem:[%s655] sm:$0xff]
    %657 = vmatpush.msra.mxu0 %v81
    %658 = vmatpush.msra.mxu0 %v80
    %659 = vmatpush.msra.mxu0 %v79
    %660 = vmatpush.msra.mxu0 %v78
    %661 = vmatpush.msra.mxu0 %v77
    %662 = vmatpush.msra.mxu0 %v76
    %663 = vmatpush.msra.mxu0 %v75
    %664 = vmatpush.msra.mxu0 %v74
    %665 = vmatpush.msra.mxu0 %v73
    %666 = vmatpush.msra.mxu0 %v72
    %667 = vmatpush.msra.mxu0 %v71
    %668 = vmatpush.msra.mxu0 %v70
    %669 = vmatpush.msra.mxu0 %v69
    %670 = vmatpush.msra.mxu0 %v68
    %671 = vmatpush.msra.mxu0 %v67
    %672 = vmatpush.msra.mxu0 %v66
    %673 = vmatmul.f32.gmra.mxu0 %v656
    %v674 = vpop.f32.mrf.mxu0
    %v675 = vadd.f32 %v133, %v674
    %676 = vdwg.mxu0
    %v677 = vtanh.pop %v675
    %678 = vmatpush.msra.mxu0 %v97
    %679 = vmatpush.msra.mxu0 %v96
    %680 = vmatpush.msra.mxu0 %v95
    %681 = vmatpush.msra.mxu0 %v94
    %682 = vmatpush.msra.mxu0 %v93
    %683 = vmatpush.msra.mxu0 %v92
    %684 = vmatpush.msra.mxu0 %v91
    %685 = vmatpush.msra.mxu0 %v90
    %686 = vmatpush.msra.mxu0 %v89
    %687 = vmatpush.msra.mxu0 %v88
    %688 = vmatpush.msra.mxu0 %v87
    %689 = vmatpush.msra.mxu0 %v86
    %690 = vmatpush.msra.mxu0 %v85
    %691 = vmatpush.msra.mxu0 %v84
    %692 = vmatpush.msra.mxu0 %v83
    %693 = vmatpush.msra.mxu0 %v82
    %694 = vmatmul.f32.gmra.mxu0 %v677
    %v695 = vpop.f32.mrf.mxu0
    %v696 = vadd.f32 %v155, %v695
    %697 = vdwg.mxu0
    %698 = vmatpush.msra.mxu0 %v113
    %699 = vmatpush.msra.mxu0 %v112
    %700 = vmatpush.msra.mxu0 %v111
    %701 = vmatpush.msra.mxu0 %v110
    %702 = vmatpush.msra.mxu0 %v109
    %703 = vmatpush.msra.mxu0 %v108
    %704 = vmatpush.msra.mxu0 %v107
    %705 = vmatpush.msra.mxu0 %v106
    %706 = vmatpush.msra.mxu0 %v105
    %707 = vmatpush.msra.mxu0 %v104
    %708 = vmatpush.msra.mxu0 %v103
    %709 = vmatpush.msra.mxu0 %v102
    %710 = vmatpush.msra.mxu0 %v101
    %711 = vmatpush.msra.mxu0 %v100
    %712 = vmatpush.msra.mxu0 %v99
    %713 = vmatpush.msra.mxu0 %v98
    %714 = vmatmul.f32.gmra.mxu0 %v631
    %v715 = vpop.f32.mrf.mxu0
    %v716 = vadd.f32 %v696, %v715
    %717 = vdwg.mxu0
    %v718 = vtanh.pop %v716
    %719 = vmatpush.msra.mxu0 %v129
    %720 = vmatpush.msra.mxu0 %v128
    %721 = vmatpush.msra.mxu0 %v127
    %722 = vmatpush.msra.mxu0 %v126
    %723 = vmatpush.msra.mxu0 %v125
    %724 = vmatpush.msra.mxu0 %v124
    %725 = vmatpush.msra.mxu0 %v123
    %726 = vmatpush.msra.mxu0 %v122
    %727 = vmatpush.msra.mxu0 %v121
    %728 = vmatpush.msra.mxu0 %v120
    %729 = vmatpush.msra.mxu0 %v119
    %730 = vmatpush.msra.mxu0 %v118
    %731 = vmatpush.msra.mxu0 %v117
    %732 = vmatpush.msra.mxu0 %v116
    %733 = vmatpush.msra.mxu0 %v115
    %734 = vmatpush.msra.mxu0 %v114
    %735 = vmatmul.f32.gmra.mxu0 %v718
    %v736 = vpop.f32.mrf.mxu0
    %v737 = vadd.f32 %v197, %v736
    %738 = vdwg.mxu0
    %s739 = scalar_lea.vmem [#allocation9], 96
    %740 = vst [vmem:[%s739] sm:$0xff] %v718
    %741 = vst [vmem:[%s739 + $0x8] sm:$0xff] %v737
    %s742 = scalar_lea.vmem [#allocation8], 56
    %v743 = vld [vmem:[%s742] sm:$0xff]
    %744 = vmatpush.msra.mxu0 %v81
    %745 = vmatpush.msra.mxu0 %v80
    %746 = vmatpush.msra.mxu0 %v79
    %747 = vmatpush.msra.mxu0 %v78
    %748 = vmatpush.msra.mxu0 %v77
    %749 = vmatpush.msra.mxu0 %v76
    %750 = vmatpush.msra.mxu0 %v75
    %751 = vmatpush.msra.mxu0 %v74
    %752 = vmatpush.msra.mxu0 %v73
    %753 = vmatpush.msra.mxu0 %v72
    %754 = vmatpush.msra.mxu0 %v71
    %755 = vmatpush.msra.mxu0 %v70
    %756 = vmatpush.msra.mxu0 %v69
    %757 = vmatpush.msra.mxu0 %v68
    %758 = vmatpush.msra.mxu0 %v67
    %759 = vmatpush.msra.mxu0 %v66
    %760 = vmatmul.f32.gmra.mxu0 %v743
    %v761 = vpop.f32.mrf.mxu0
    %v762 = vadd.f32 %v133, %v761
    %763 = vdwg.mxu0
    %v764 = vtanh.pop %v762
    %765 = vmatpush.msra.mxu0 %v97
    %766 = vmatpush.msra.mxu0 %v96
    %767 = vmatpush.msra.mxu0 %v95
    %768 = vmatpush.msra.mxu0 %v94
    %769 = vmatpush.msra.mxu0 %v93
    %770 = vmatpush.msra.mxu0 %v92
    %771 = vmatpush.msra.mxu0 %v91
    %772 = vmatpush.msra.mxu0 %v90
    %773 = vmatpush.msra.mxu0 %v89
    %774 = vmatpush.msra.mxu0 %v88
    %775 = vmatpush.msra.mxu0 %v87
    %776 = vmatpush.msra.mxu0 %v86
    %777 = vmatpush.msra.mxu0 %v85
    %778 = vmatpush.msra.mxu0 %v84
    %779 = vmatpush.msra.mxu0 %v83
    %780 = vmatpush.msra.mxu0 %v82
    %781 = vmatmul.f32.gmra.mxu0 %v764
    %v782 = vpop.f32.mrf.mxu0
    %v783 = vadd.f32 %v155, %v782
    %784 = vdwg.mxu0
    %785 = vmatpush.msra.mxu0 %v113
    %786 = vmatpush.msra.mxu0 %v112
    %787 = vmatpush.msra.mxu0 %v111
    %788 = vmatpush.msra.mxu0 %v110
    %789 = vmatpush.msra.mxu0 %v109
    %790 = vmatpush.msra.mxu0 %v108
    %791 = vmatpush.msra.mxu0 %v107
    %792 = vmatpush.msra.mxu0 %v106
    %793 = vmatpush.msra.mxu0 %v105
    %794 = vmatpush.msra.mxu0 %v104
    %795 = vmatpush.msra.mxu0 %v103
    %796 = vmatpush.msra.mxu0 %v102
    %797 = vmatpush.msra.mxu0 %v101
    %798 = vmatpush.msra.mxu0 %v100
    %799 = vmatpush.msra.mxu0 %v99
    %800 = vmatpush.msra.mxu0 %v98
    %801 = vmatmul.f32.gmra.mxu0 %v718
    %v802 = vpop.f32.mrf.mxu0
    %v803 = vadd.f32 %v783, %v802
    %804 = vdwg.mxu0
    %v805 = vtanh.pop %v803
    %806 = vmatpush.msra.mxu0 %v129
    %807 = vmatpush.msra.mxu0 %v128
    %808 = vmatpush.msra.mxu0 %v127
    %809 = vmatpush.msra.mxu0 %v126
    %810 = vmatpush.msra.mxu0 %v125
    %811 = vmatpush.msra.mxu0 %v124
    %812 = vmatpush.msra.mxu0 %v123
    %813 = vmatpush.msra.mxu0 %v122
    %814 = vmatpush.msra.mxu0 %v121
    %815 = vmatpush.msra.mxu0 %v120
    %816 = vmatpush.msra.mxu0 %v119
    %817 = vmatpush.msra.mxu0 %v118
    %818 = vmatpush.msra.mxu0 %v117
    %819 = vmatpush.msra.mxu0 %v116
    %820 = vmatpush.msra.mxu0 %v115
    %821 = vmatpush.msra.mxu0 %v114
    %822 = vmatmul.f32.gmra.mxu0 %v805
    %v823 = vpop.f32.mrf.mxu0
    %v824 = vadd.f32 %v197, %v823
    %825 = vdwg.mxu0
    %s826 = scalar_lea.vmem [#allocation9], 112
    %827 = vst [vmem:[%s826] sm:$0xff] %v805
    %828 = vst [vmem:[%s826 + $0x8] sm:$0xff] %v824
    %829 = vst [vmem:[#allocation2] sm:$0xff] %v805
    // Predicated region
    $region30: #{tpu_custom_call.1} parent=1 // pred_check
      _
    $region31: #{tpu_custom_call.1} parent=1 // pred_check_branch
      %831 = sbr.rel (0) target = $region33
    $region32: #{tpu_custom_call.1} parent=1 // pred_region
      %833 = vsyncadd [#allocation5], 0
      %s834 = sshll.u32 [#allocation9], 4
      %s835 = int_to_ptr.vmem [resolvable:$true] %s834
      %s836 = sshll.u32 %s3, 4
      %s837 = int_to_ptr.hbm [resolvable:$true] %s836
      %842 = dma.vmem_to_hbm [thread:$0]  %s835, 2048, %s837, [#allocation5], 256, 256, 16
    $region33: #{tpu_custom_call.1} parent=1 // pred_fallthru
      _
    // Predicated region
    $region34: #{tpu_custom_call.1} parent=1 // pred_check
      _
    $region35: #{tpu_custom_call.1} parent=1 // pred_check_branch
      %844 = sbr.rel (0) target = $region37
    $region36: #{tpu_custom_call.1} parent=1 // pred_region
      %846 = dma.done [#allocation5], 2048
    $region37: #{tpu_custom_call.1} parent=1 // pred_fallthru
      _
    %847 = vsyncpa [#allocation4], 1
    %848 = vsyncpa [#allocation7], 1
    %849 = vsyncpa [#allocation5], 1

</llo_original>
